<compile_context>
chip_gen: v5e
topology: v5e:2x2
jax: 0.10.0
libtpu: 0.0.40
codegen_flags: <defaults>
</compile_context>

<pallas_src>
import jax
import jax.numpy as jnp
from jax.experimental import pallas as pl
from jax.experimental.pallas import tpu as pltpu

_SUBLANE = 8
_LANE = 128


def _round_up(x, m):
    return ((x + m - 1) // m) * m


def mlp_kernel(x_ref, w1_ref, b1_ref, w2_ref, b2_ref, w3_ref, b3_ref, o_ref):
    """relu(x@W1+b1) -> relu(.@W2+b2) -> .@W3+b3 ; bf16 MXU, f32 accumulate."""
    x = x_ref[...].astype(jnp.bfloat16)                      # (bm, k_pad)

    h1 = jnp.dot(x, w1_ref[...], preferred_element_type=jnp.float32)
    h1 = jnp.maximum(h1 + b1_ref[...], 0.0)                  # (bm, 128) f32

    h2 = jnp.dot(h1.astype(jnp.bfloat16), w2_ref[...],
                 preferred_element_type=jnp.float32)
    h2 = jnp.maximum(h2 + b2_ref[...], 0.0)                  # (bm, 256) f32

    q = jnp.dot(h2.astype(jnp.bfloat16), w3_ref[...],
                preferred_element_type=jnp.float32)          # (bm, n_pad) f32
    na = o_ref.shape[-1]
    o_ref[...] = (q[:, :na] + b3_ref[...]).astype(o_ref.dtype)   # (bm, na)


def prepare_params(params, input_size, nb_action):
    """One-time (per parameter update) pad + bf16 cast of the weights.

    Returns an arrays-only pytree suitable for jit:
      w1 (k_pad,128) bf16, b1 (1,128) f32, w2 (128,256) bf16, b2 (1,256) f32,
      w3 (256,n_pad) bf16, b3 (1,nb_action) f32.
    """
    k_pad = _round_up(max(input_size, _SUBLANE), _SUBLANE)
    n_pad = _round_up(max(nb_action, _LANE), _LANE)

    w1 = jnp.zeros((k_pad, 128), jnp.bfloat16)
    w1 = w1.at[:input_size, :].set(params["w1"].astype(jnp.bfloat16))
    w3 = jnp.zeros((256, n_pad), jnp.bfloat16)
    w3 = w3.at[:, :nb_action].set(params["w3"].astype(jnp.bfloat16))
    return {
        "w1": w1,
        "b1": params["b1"].astype(jnp.float32).reshape(1, 128),
        "w2": params["w2"].astype(jnp.bfloat16),
        "b2": params["b2"].astype(jnp.float32).reshape(1, 256),
        "w3": w3,
        "b3": params["b3"].astype(jnp.float32).reshape(1, nb_action),
    }


def network_forward(state, prep, *, block_batch=None):
    """Pallas forward. state: (B, input_size) f32 -> (B, nb_action) f32."""
    B, input_size = state.shape
    k_pad = prep["w1"].shape[0]
    n_pad = prep["w3"].shape[1]
    nb_action = prep["b3"].shape[1]

    # Batch tile: multiple of 8, up to 1024; capped at cdiv(B,2) so any batch
    # with >= 16 rows produces >= 2 "parallel" grid steps (both v7x TCs busy).
    if block_batch is None:
        bm = min(1024, max(_SUBLANE, _round_up(pl.cdiv(B, 2), _SUBLANE)))
    else:
        bm = max(_SUBLANE, _round_up(block_batch, _SUBLANE))
    B_pad = _round_up(B, bm)
    grid = (B_pad // bm,)

    # Single fused pad (batch rows + K columns) in f32; skipped when aligned.
    x = state
    if B_pad != B or k_pad != input_size:
        x = jnp.pad(state, ((0, B_pad - B), (0, k_pad - input_size)))

    flops = 2 * B_pad * (k_pad * 128 + 128 * 256 + 256 * n_pad)
    bytes_accessed = (B_pad * k_pad * 4 + B_pad * nb_action * 4
                      + 2 * (k_pad * 128 + 128 * 256 + 256 * n_pad)
                      + 4 * (128 + 256 + nb_action))

    def const(shape):
        # Tiny resident weight/bias blocks (constant index_map).
        # TODO(synk): pipeline_mode=pl.Buffered(1) would drop the redundant
        # second buffer for these invariant blocks (~70 KB saving; skipped).
        return pl.BlockSpec(shape, lambda i: (0, 0))

    out = pl.pallas_call(
        mlp_kernel,
        out_shape=jax.ShapeDtypeStruct((B_pad, nb_action), jnp.float32),
        grid_spec=pl.GridSpec(
            grid=grid,
            in_specs=[
                pl.BlockSpec((bm, k_pad), lambda i: (i, 0)),   # state tile
                const(prep["w1"].shape), const(prep["b1"].shape),
                const(prep["w2"].shape), const(prep["b2"].shape),
                const(prep["w3"].shape), const(prep["b3"].shape),
            ],
            out_specs=pl.BlockSpec((bm, nb_action), lambda i: (i, 0)),
        ),
        compiler_params=pltpu.CompilerParams(
            # TODO(synk): pltpu.CORE_PARALLEL is an option on v7x; PARALLEL is
            # kept for portability across v5e/v6e/v7x.
            dimension_semantics=(pltpu.PARALLEL,),
            vmem_limit_bytes=32 * 1024 * 1024,   # headroom for big bm on v5e
        ),
        cost_estimate=pl.CostEstimate(
            flops=flops, transcendentals=0, bytes_accessed=bytes_accessed),
    )(x, prep["w1"], prep["b1"], prep["w2"], prep["b2"],
      prep["w3"], prep["b3"])

    if B_pad != B:
        out = out[:B]
    return out


def init_params(key, input_size, nb_action):
    """PyTorch nn.Linear-style init: U(-1/sqrt(fan_in), 1/sqrt(fan_in))."""
    dims = [(input_size, 128), (128, 256), (256, nb_action)]
    params = {}
    for idx, (fan_in, fan_out) in enumerate(dims, start=1):
        key, kw, kb = jax.random.split(key, 3)
        bound = 1.0 / jnp.sqrt(jnp.float32(fan_in))
        params[f"w{idx}"] = jax.random.uniform(
            kw, (fan_in, fan_out), jnp.float32, -bound, bound)
        params[f"b{idx}"] = jax.random.uniform(
            kb, (1, fan_out), jnp.float32, -bound, bound)
    return params


def reference_forward(state, params):
    """Pure-JAX f32 reference of the PyTorch forward pass."""
    x = jnp.maximum(state @ params["w1"] + params["b1"], 0.0)
    x = jnp.maximum(x @ params["w2"] + params["b2"], 0.0)
    return x @ params["w3"] + params["b3"]


if __name__ == "__main__":
    input_size = 5    # sensor signals
    nb_action = 3     # actions

    key = jax.random.PRNGKey(0)
    key, kx1, kx2, kx3 = jax.random.split(key, 4)
    params = init_params(key, input_size, nb_action)
    prep = prepare_params(params, input_size, nb_action)   # hoisted, one-time

    # 1) Small single-step batch.
    state_small = jax.random.normal(kx1, (8, input_size), dtype=jnp.float32)
    q_small = jax.block_until_ready(network_forward(state_small, prep))
    ref_small = reference_forward(state_small, params)
    assert q_small.shape == (8, nb_action)
    assert jnp.allclose(q_small, ref_small, atol=2e-2, rtol=2e-2), \
        "small-batch mismatch vs reference"

    # 2) Ragged replay-style batch: non-divisible B, explicit bm -> grid=(3,).
    state_ragged = jax.random.normal(kx2, (37, input_size), dtype=jnp.float32)
    q_ragged = jax.block_until_ready(
        network_forward(state_ragged, prep, block_batch=16))
    ref_ragged = reference_forward(state_ragged, params)
    assert q_ragged.shape == (37, nb_action)
    assert jnp.allclose(q_ragged, ref_ragged, atol=2e-2, rtol=2e-2), \
        "ragged-batch mismatch vs reference"

    # 3) Large batch under jit: bm=1024, grid=(2,) -> both v7x TensorCores.
    fwd = jax.jit(network_forward)
    state_large = jax.random.normal(kx3, (2048, input_size), dtype=jnp.float32)
    q_large = jax.block_until_ready(fwd(state_large, prep))
    ref_large = reference_forward(state_large, params)
    assert q_large.shape == (2048, nb_action)
    assert jnp.allclose(q_large, ref_large, atol=2e-2, rtol=2e-2), \
        "large-batch mismatch vs reference"

    print("KERNEL_OK")
</pallas_src>

<mosaic_0001>
module attributes {stable_mosaic.version = 11 : i64} {
  func.func @mlp_kernel(%arg0: i32, %arg1: memref<8x8xf32, #tpu.memory_space<vmem>>, %arg2: memref<8x128xbf16, #tpu.memory_space<vmem>>, %arg3: memref<1x128xf32, #tpu.memory_space<vmem>>, %arg4: memref<128x256xbf16, #tpu.memory_space<vmem>>, %arg5: memref<1x256xf32, #tpu.memory_space<vmem>>, %arg6: memref<256x128xbf16, #tpu.memory_space<vmem>>, %arg7: memref<1x3xf32, #tpu.memory_space<vmem>>, %arg8: memref<8x3xf32, #tpu.memory_space<vmem>>) attributes {dimension_semantics = [#tpu.dimension_semantics<parallel>], iteration_bounds = array<i64: 1>, scalar_prefetch = 0 : i64, scratch_operands = 0 : i64, tpu.core_type = #tpu.core_type<tc>, window_params = [{transform_indices = @transform_0, window_bounds = array<i64: 8, 8>}, {pipeline_mode = #tpu.pipeline_mode<synchronous>, transform_indices = @transform_1, window_bounds = array<i64: 8, 128>}, {pipeline_mode = #tpu.pipeline_mode<synchronous>, transform_indices = @transform_2, window_bounds = array<i64: 1, 128>}, {pipeline_mode = #tpu.pipeline_mode<synchronous>, transform_indices = @transform_3, window_bounds = array<i64: 128, 256>}, {pipeline_mode = #tpu.pipeline_mode<synchronous>, transform_indices = @transform_4, window_bounds = array<i64: 1, 256>}, {pipeline_mode = #tpu.pipeline_mode<synchronous>, transform_indices = @transform_5, window_bounds = array<i64: 256, 128>}, {pipeline_mode = #tpu.pipeline_mode<synchronous>, transform_indices = @transform_6, window_bounds = array<i64: 1, 3>}, {transform_indices = @transform_7, window_bounds = array<i64: 8, 3>}]} {
    %c0 = arith.constant 0 : index
    %c0_0 = arith.constant 0 : index
    %0 = vector.load %arg1[%c0, %c0_0] : memref<8x8xf32, #tpu.memory_space<vmem>>, vector<8x8xf32>
    %1 = arith.truncf %0 : vector<8x8xf32> to vector<8x8xbf16>
    %c0_1 = arith.constant 0 : index
    %c0_2 = arith.constant 0 : index
    %2 = vector.load %arg2[%c0_1, %c0_2] : memref<8x128xbf16, #tpu.memory_space<vmem>>, vector<8x128xbf16>
    %cst = arith.constant dense<0.000000e+00> : vector<8x128xf32>
    %3 = tpu.matmul %1, %2, %cst {dimension_numbers = #tpu.dot_dimension_numbers<[1], [0], [0], [1], [0, 0, 1, 1], [], []>} : vector<8x8xbf16>, vector<8x128xbf16>, vector<8x128xf32> -> vector<8x128xf32>
    %c0_3 = arith.constant 0 : index
    %c0_4 = arith.constant 0 : index
    %4 = vector.load %arg3[%c0_3, %c0_4] : memref<1x128xf32, #tpu.memory_space<vmem>>, vector<1x128xf32>
    %5 = vector.broadcast %4 : vector<1x128xf32> to vector<8x128xf32>
    %6 = arith.addf %3, %5 : vector<8x128xf32>
    %cst_5 = arith.constant 0.000000e+00 : f32
    %7 = vector.broadcast %cst_5 : f32 to vector<8x128xf32>
    %8 = arith.maximumf %6, %7 : vector<8x128xf32>
    %9 = arith.truncf %8 : vector<8x128xf32> to vector<8x128xbf16>
    %c0_6 = arith.constant 0 : index
    %c0_7 = arith.constant 0 : index
    %10 = vector.load %arg4[%c0_6, %c0_7] : memref<128x256xbf16, #tpu.memory_space<vmem>>, vector<128x256xbf16>
    %cst_8 = arith.constant dense<0.000000e+00> : vector<8x256xf32>
    %11 = tpu.matmul %9, %10, %cst_8 {dimension_numbers = #tpu.dot_dimension_numbers<[1], [0], [0], [1], [0, 0, 1, 1], [], []>} : vector<8x128xbf16>, vector<128x256xbf16>, vector<8x256xf32> -> vector<8x256xf32>
    %c0_9 = arith.constant 0 : index
    %c0_10 = arith.constant 0 : index
    %12 = vector.load %arg5[%c0_9, %c0_10] : memref<1x256xf32, #tpu.memory_space<vmem>>, vector<1x256xf32>
    %13 = vector.broadcast %12 : vector<1x256xf32> to vector<8x256xf32>
    %14 = arith.addf %11, %13 : vector<8x256xf32>
    %cst_11 = arith.constant 0.000000e+00 : f32
    %15 = vector.broadcast %cst_11 : f32 to vector<8x256xf32>
    %16 = arith.maximumf %14, %15 : vector<8x256xf32>
    %17 = arith.truncf %16 : vector<8x256xf32> to vector<8x256xbf16>
    %c0_12 = arith.constant 0 : index
    %c0_13 = arith.constant 0 : index
    %18 = vector.load %arg6[%c0_12, %c0_13] : memref<256x128xbf16, #tpu.memory_space<vmem>>, vector<256x128xbf16>
    %cst_14 = arith.constant dense<0.000000e+00> : vector<8x128xf32>
    %19 = tpu.matmul %17, %18, %cst_14 {dimension_numbers = #tpu.dot_dimension_numbers<[1], [0], [0], [1], [0, 0, 1, 1], [], []>} : vector<8x256xbf16>, vector<256x128xbf16>, vector<8x128xf32> -> vector<8x128xf32>
    %20 = vector.extract_strided_slice %19 {offsets = [0, 0], sizes = [8, 3], strides = [1, 1]} : vector<8x128xf32> to vector<8x3xf32>
    %c0_15 = arith.constant 0 : index
    %c0_16 = arith.constant 0 : index
    %21 = vector.load %arg7[%c0_15, %c0_16] : memref<1x3xf32, #tpu.memory_space<vmem>>, vector<1x3xf32>
    %22 = vector.broadcast %21 : vector<1x3xf32> to vector<8x3xf32>
    %23 = arith.addf %20, %22 : vector<8x3xf32>
    %c0_17 = arith.constant 0 : index
    %c0_18 = arith.constant 0 : index
    %24 = vector.load %arg8[%c0_17, %c0_18] : memref<8x3xf32, #tpu.memory_space<vmem>>, vector<8x3xf32>
    tpu.vector_store %arg8[%c0_17, %c0_18], %23 {strides = array<i32>} : memref<8x3xf32, #tpu.memory_space<vmem>>, vector<8x3xf32>,
    return
  }
  func.func @transform_0(%arg0: i32) -> (i32, i32) {
    %c0_i32 = arith.constant 0 : i32
    %c0_i32_0 = arith.constant 0 : i32
    return %arg0, %c0_i32 : i32, i32
  }
  func.func @transform_1(%arg0: i32) -> (i32, i32) {
    %c0_i32 = arith.constant 0 : i32
    %c0_i32_0 = arith.constant 0 : i32
    %c0_i32_1 = arith.constant 0 : i32
    return %c0_i32, %c0_i32_0 : i32, i32
  }
  func.func @transform_2(%arg0: i32) -> (i32, i32) {
    %c0_i32 = arith.constant 0 : i32
    %c0_i32_0 = arith.constant 0 : i32
    %c0_i32_1 = arith.constant 0 : i32
    return %c0_i32, %c0_i32_0 : i32, i32
  }
  func.func @transform_3(%arg0: i32) -> (i32, i32) {
    %c0_i32 = arith.constant 0 : i32
    %c0_i32_0 = arith.constant 0 : i32
    %c0_i32_1 = arith.constant 0 : i32
    return %c0_i32, %c0_i32_0 : i32, i32
  }
  func.func @transform_4(%arg0: i32) -> (i32, i32) {
    %c0_i32 = arith.constant 0 : i32
    %c0_i32_0 = arith.constant 0 : i32
    %c0_i32_1 = arith.constant 0 : i32
    return %c0_i32, %c0_i32_0 : i32, i32
  }
  func.func @transform_5(%arg0: i32) -> (i32, i32) {
    %c0_i32 = arith.constant 0 : i32
    %c0_i32_0 = arith.constant 0 : i32
    %c0_i32_1 = arith.constant 0 : i32
    return %c0_i32, %c0_i32_0 : i32, i32
  }
  func.func @transform_6(%arg0: i32) -> (i32, i32) {
    %c0_i32 = arith.constant 0 : i32
    %c0_i32_0 = arith.constant 0 : i32
    %c0_i32_1 = arith.constant 0 : i32
    return %c0_i32, %c0_i32_0 : i32, i32
  }
  func.func @transform_7(%arg0: i32) -> (i32, i32) {
    %c0_i32 = arith.constant 0 : i32
    %c0_i32_0 = arith.constant 0 : i32
    return %arg0, %c0_i32 : i32, i32
  }
}

</mosaic_0001>

<llo_original>
// kernel: tpu_custom_call.1
$region0: #{tpu_custom_call.1}
  #allocation0 [shape = 'u32[]', space=smem, size = 0x4, offset = 0x4, fixed_abs, tag = 'smem constant byte address 0x4 - core index']
  #allocation1 [shape = 'u32[72,128]{1,0:T(1,128)}', space=vmem, size = 0x9000, scoped, tag = 'internal scratch']
  %s0 = inlined_call_operand.hbm [shape: f32[8,8], index: 0, kind: input, shape index: {}]
  %s1 = inlined_call_operand.hbm [shape: bf16[8,128], index: 1, kind: input, shape index: {}]
  %s2 = inlined_call_operand.vmem [shape: f32[1,128], index: 2, kind: input, shape index: {}]
  %s3 = inlined_call_operand.hbm [shape: bf16[128,256], index: 3, kind: input, shape index: {}]
  %s4 = inlined_call_operand.vmem [shape: f32[1,256], index: 4, kind: input, shape index: {}]
  %s5 = inlined_call_operand.hbm [shape: bf16[256,128], index: 5, kind: input, shape index: {}]
  %s6 = inlined_call_operand.vmem [shape: f32[1,3], index: 6, kind: input, shape index: {}]
  %s7 = inlined_call_operand.vmem [shape: f32[8,3], index: 7, kind: output, shape index: {}]
  %s8 = sld [smem:[#allocation0]]
  $region54: #{tpu_custom_call.1} parent=0
    _
  %s10 = ssub.s32 1, %s8
  %s11 = scalar_select 0, %s10, %s8
  $region1: #{tpu_custom_call.1} parent=0
    #allocation2 [shape = 'u8[4096]{0}', space=vmem, size = 0x1000, scoped, tag = 'input window, operand 0, single buffered']
    #allocation3 [shape = 's32[1]{0}', space=sflag, size = 0x4, scoped, tag = 'scoped memory for tpu_custom_call.1']
    #allocation4 [shape = 'u8[2048]{0}', space=vmem, size = 0x800, scoped, tag = 'input window, operand 1, single buffered']
    #allocation5 [shape = 's32[1]{0}', space=sflag, size = 0x4, scoped, tag = 'scoped memory for tpu_custom_call.1']
    #allocation6 [shape = 'u8[65536]{0}', space=vmem, size = 0x10000, scoped, tag = 'input window, operand 3, single buffered']
    #allocation7 [shape = 'u8[65536]{0}', space=vmem, size = 0x10000, scoped, tag = 'input window, operand 5, single buffered']
    #allocation8 [shape = 's32[1]{0}', space=sflag, size = 0x4, scoped, tag = 'scoped memory for tpu_custom_call.1']
    %12 = vsyncpa [#allocation3], 0
    %13 = vsyncpa [#allocation5], 0
    %14 = vsyncpa [#allocation8], 0
    // Predicated region
    $region2: #{tpu_custom_call.1} parent=1 // pred_check
      _
    $region3: #{tpu_custom_call.1} parent=1 // pred_check_branch
      %16 = sbr.rel (0) target = $region5
    $region4: #{tpu_custom_call.1} parent=1 // pred_region
      %18 = vsyncadd [#allocation3], 0
      %s20 = sshll.u32 %s0, 4
      %s21 = int_to_ptr.hbm [resolvable:$true] %s20
      %s22 = sshll.u32 [#allocation2], 4
      %s23 = int_to_ptr.vmem [resolvable:$true] %s22
      %25 = dma.hbm_to_vmem [thread:$0]  %s21, 128, %s23, [#allocation3]
    $region5: #{tpu_custom_call.1} parent=1 // pred_fallthru
      _
    // Predicated region
    $region6: #{tpu_custom_call.1} parent=1 // pred_check
      _
    $region7: #{tpu_custom_call.1} parent=1 // pred_check_branch
      %27 = sbr.rel (0) target = $region9
    $region8: #{tpu_custom_call.1} parent=1 // pred_region
      %29 = vsyncadd [#allocation5], 0
      %s31 = sshll.u32 %s1, 4
      %s32 = int_to_ptr.hbm [resolvable:$true] %s31
      %s33 = sshll.u32 [#allocation4], 4
      %s34 = int_to_ptr.vmem [resolvable:$true] %s33
      %36 = dma.hbm_to_vmem [thread:$0]  %s32, 64, %s34, [#allocation5]
    $region9: #{tpu_custom_call.1} parent=1 // pred_fallthru
      _
    // Predicated region
    $region10: #{tpu_custom_call.1} parent=1 // pred_check
      _
    $region11: #{tpu_custom_call.1} parent=1 // pred_check_branch
      %38 = sbr.rel (0) target = $region13
    $region12: #{tpu_custom_call.1} parent=1 // pred_region
      _
    $region13: #{tpu_custom_call.1} parent=1 // pred_fallthru
      _
    // Predicated region
    $region14: #{tpu_custom_call.1} parent=1 // pred_check
      _
    $region15: #{tpu_custom_call.1} parent=1 // pred_check_branch
      %40 = sbr.rel (0) target = $region17
    $region16: #{tpu_custom_call.1} parent=1 // pred_region
      %42 = vsyncadd [#allocation5], 0
      %s43 = sshll.u32 %s3, 4
      %s44 = int_to_ptr.hbm [resolvable:$true] %s43
      %s45 = sshll.u32 [#allocation6], 4
      %s46 = int_to_ptr.vmem [resolvable:$true] %s45
      %51 = dma.hbm_to_vmem [thread:$0]  %s44, 2048, %s46, [#allocation5], 128, 128, 8
    $region17: #{tpu_custom_call.1} parent=1 // pred_fallthru
      _
    // Predicated region
    $region18: #{tpu_custom_call.1} parent=1 // pred_check
      _
    $region19: #{tpu_custom_call.1} parent=1 // pred_check_branch
      %53 = sbr.rel (0) target = $region21
    $region20: #{tpu_custom_call.1} parent=1 // pred_region
      _
    $region21: #{tpu_custom_call.1} parent=1 // pred_fallthru
      _
    // Predicated region
    $region22: #{tpu_custom_call.1} parent=1 // pred_check
      _
    $region23: #{tpu_custom_call.1} parent=1 // pred_check_branch
      %55 = sbr.rel (0) target = $region25
    $region24: #{tpu_custom_call.1} parent=1 // pred_region
      %57 = vsyncadd [#allocation8], 0
      %s58 = sshll.u32 %s5, 4
      %s59 = int_to_ptr.hbm [resolvable:$true] %s58
      %s60 = sshll.u32 [#allocation7], 4
      %s61 = int_to_ptr.vmem [resolvable:$true] %s60
      %66 = dma.hbm_to_vmem [thread:$0]  %s59, 2048, %s61, [#allocation8], 64, 64, 4
    $region25: #{tpu_custom_call.1} parent=1 // pred_fallthru
      _
    // Predicated region
    $region26: #{tpu_custom_call.1} parent=1 // pred_check
      _
    $region27: #{tpu_custom_call.1} parent=1 // pred_check_branch
      %68 = sbr.rel (0) target = $region29
    $region28: #{tpu_custom_call.1} parent=1 // pred_region
      _
    $region29: #{tpu_custom_call.1} parent=1 // pred_fallthru
      _
    // Predicated region
    $region30: #{tpu_custom_call.1} parent=1 // pred_check
      _
    $region31: #{tpu_custom_call.1} parent=1 // pred_check_branch
      %70 = sbr.rel (0) target = $region33
    $region32: #{tpu_custom_call.1} parent=1 // pred_region
      %72 = dma.done [#allocation3], 128
    $region33: #{tpu_custom_call.1} parent=1 // pred_fallthru
      _
    // Predicated region
    $region34: #{tpu_custom_call.1} parent=1 // pred_check
      _
    $region35: #{tpu_custom_call.1} parent=1 // pred_check_branch
      %74 = sbr.rel (0) target = $region37
    $region36: #{tpu_custom_call.1} parent=1 // pred_region
      %76 = dma.done [#allocation5], 64
    $region37: #{tpu_custom_call.1} parent=1 // pred_fallthru
      _
    // Predicated region
    $region38: #{tpu_custom_call.1} parent=1 // pred_check
      _
    $region39: #{tpu_custom_call.1} parent=1 // pred_check_branch
      %78 = sbr.rel (0) target = $region41
    $region40: #{tpu_custom_call.1} parent=1 // pred_region
      %80 = dma.done [#allocation5], 2048
    $region41: #{tpu_custom_call.1} parent=1 // pred_fallthru
      _
    // Predicated region
    $region42: #{tpu_custom_call.1} parent=1 // pred_check
      _
    $region43: #{tpu_custom_call.1} parent=1 // pred_check_branch
      %82 = sbr.rel (0) target = $region45
    $region44: #{tpu_custom_call.1} parent=1 // pred_region
      %84 = dma.done [#allocation8], 2048
    $region45: #{tpu_custom_call.1} parent=1 // pred_fallthru
      _
    %v86 = vld [vmem:[#allocation2] sm:$0xff]
    %v87 = vpack.c.bf16 %v86, %v86
    %v88 = vld [vmem:[#allocation4] sm:$0xf]
    %v89 = vld [vmem:[%s2] sm:$0x1]
    %v91 = vperm.slane %v89, 0
    %vm93 = vcmask 64512
    %v95 = vsel %vm93, %v87, 0
    %vm97 = vcmask 1043456
    %v99 = vsel %vm97, %v88, 0
    %101 = vmatpush.bf16.msra.mxu0 0
    %102 = vmatpush.bf16.msra.mxu0 0
    %103 = vmatpush.bf16.msra.mxu0 0
    %104 = vmatpush.bf16.msra.mxu0 0
    %105 = vmatpush.bf16.msra.mxu0 0
    %106 = vmatpush.bf16.msra.mxu0 0
    %107 = vmatpush.bf16.msra.mxu0 0
    %108 = vmatpush.bf16.msra.mxu0 %v99
    %109 = vmatmul.bf16.gmra.mxu0 %v95
    %v110 = vpop.f32.mrf.mxu0
    %v111 = vadd.f32 %v91, %v110
    %v112 = vpop.f32.mrf.mxu0
    %113 = vdwg.mxu0
    %v114 = vmax.f32 %v111, 0.0
    %v115 = vpack.c.bf16 %v114, %v114
    %v116 = vld [vmem:[#allocation6] sm:$0xff]
    %v117 = vld [vmem:[#allocation6 + $0x8] sm:$0xff]
    %v118 = vld [vmem:[#allocation6 + $0x10] sm:$0xff]
    %v119 = vld [vmem:[#allocation6 + $0x18] sm:$0xff]
    %v120 = vld [vmem:[#allocation6 + $0x20] sm:$0xff]
    %v121 = vld [vmem:[#allocation6 + $0x28] sm:$0xff]
    %v122 = vld [vmem:[#allocation6 + $0x30] sm:$0xff]
    %v123 = vld [vmem:[#allocation6 + $0x38] sm:$0xff]
    %v124 = vld [vmem:[#allocation6 + $0x40] sm:$0xff]
    %v125 = vld [vmem:[#allocation6 + $0x48] sm:$0xff]
    %v126 = vld [vmem:[#allocation6 + $0x50] sm:$0xff]
    %v127 = vld [vmem:[#allocation6 + $0x58] sm:$0xff]
    %v128 = vld [vmem:[#allocation6 + $0x60] sm:$0xff]
    %v129 = vld [vmem:[#allocation6 + $0x68] sm:$0xff]
    %v130 = vld [vmem:[#allocation6 + $0x70] sm:$0xff]
    %v131 = vld [vmem:[#allocation6 + $0x78] sm:$0xff]
    %v132 = vld [vmem:[%s4] sm:$0x3]
    %v134 = vperm.slane %v132, 0
    %v135 = vperm.slane %v132, 1
    %v154 = vunpack.c.l.b16 %v116
    %v155 = vunpack.c.h.b16 %v116
    %v156 = vunpack.c.l.b16 %v117
    %v157 = vunpack.c.h.b16 %v117
    %v158 = vunpack.c.l.b16 %v118
    %v159 = vunpack.c.h.b16 %v118
    %v160 = vunpack.c.l.b16 %v119
    %v161 = vunpack.c.h.b16 %v119
    %v162 = vunpack.c.l.b16 %v120
    %v163 = vunpack.c.h.b16 %v120
    %v164 = vunpack.c.l.b16 %v121
    %v165 = vunpack.c.h.b16 %v121
    %v166 = vunpack.c.l.b16 %v122
    %v167 = vunpack.c.h.b16 %v122
    %v168 = vunpack.c.l.b16 %v123
    %v169 = vunpack.c.h.b16 %v123
    %v170 = vunpack.c.l.b16 %v124
    %v171 = vunpack.c.h.b16 %v124
    %v172 = vunpack.c.l.b16 %v125
    %v173 = vunpack.c.h.b16 %v125
    %v174 = vunpack.c.l.b16 %v126
    %v175 = vunpack.c.h.b16 %v126
    %v176 = vunpack.c.l.b16 %v127
    %v177 = vunpack.c.h.b16 %v127
    %v178 = vunpack.c.l.b16 %v128
    %v179 = vunpack.c.h.b16 %v128
    %v180 = vunpack.c.l.b16 %v129
    %v181 = vunpack.c.h.b16 %v129
    %v182 = vunpack.c.l.b16 %v130
    %v183 = vunpack.c.h.b16 %v130
    %v184 = vunpack.c.l.b16 %v131
    %v185 = vunpack.c.h.b16 %v131
    %v186 = vpack.c.b16 %v156, %v154
    %v187 = vpack.c.b16 %v157, %v155
    %v188 = vpack.c.b16 %v160, %v158
    %v189 = vpack.c.b16 %v161, %v159
    %v190 = vpack.c.b16 %v164, %v162
    %v191 = vpack.c.b16 %v165, %v163
    %v192 = vpack.c.b16 %v168, %v166
    %v193 = vpack.c.b16 %v169, %v167
    %v194 = vpack.c.b16 %v172, %v170
    %v195 = vpack.c.b16 %v173, %v171
    %v196 = vpack.c.b16 %v176, %v174
    %v197 = vpack.c.b16 %v177, %v175
    %v198 = vpack.c.b16 %v180, %v178
    %v199 = vpack.c.b16 %v181, %v179
    %v200 = vpack.c.b16 %v184, %v182
    %v201 = vpack.c.b16 %v185, %v183
    %218 = vmatpush.bf16.msra.mxu0 %v200
    %219 = vmatpush.bf16.msra.mxu0 %v198
    %220 = vmatpush.bf16.msra.mxu0 %v196
    %221 = vmatpush.bf16.msra.mxu0 %v194
    %222 = vmatpush.bf16.msra.mxu0 %v192
    %223 = vmatpush.bf16.msra.mxu0 %v190
    %224 = vmatpush.bf16.msra.mxu0 %v188
    %225 = vmatpush.bf16.msra.mxu0 %v186
    %226 = vmatmul.bf16.gmra.mxu0 %v115
    %v227 = vpop.f32.mrf.mxu0
    %v228 = vadd.f32 %v134, %v227
    %v229 = vpop.f32.mrf.mxu0
    %230 = vdwg.mxu0
    %231 = vmatpush.bf16.msra.mxu0 %v201
    %232 = vmatpush.bf16.msra.mxu0 %v199
    %233 = vmatpush.bf16.msra.mxu0 %v197
    %234 = vmatpush.bf16.msra.mxu0 %v195
    %235 = vmatpush.bf16.msra.mxu0 %v193
    %236 = vmatpush.bf16.msra.mxu0 %v191
    %237 = vmatpush.bf16.msra.mxu0 %v189
    %238 = vmatpush.bf16.msra.mxu0 %v187
    %239 = vmatmul.bf16.gmra.mxu0 %v115
    %v240 = vpop.f32.mrf.mxu0
    %v241 = vadd.f32 %v135, %v240
    %v242 = vpop.f32.mrf.mxu0
    %243 = vdwg.mxu0
    %v244 = vmax.f32 %v228, 0.0
    %v245 = vmax.f32 %v241, 0.0
    %v246 = vpack.c.bf16 %v244, %v244
    %v247 = vpack.c.bf16 %v245, %v245
    %v248 = vld [vmem:[#allocation7] sm:$0xf]
    %v249 = vld [vmem:[#allocation7 + $0x4] sm:$0xf]
    %v250 = vld [vmem:[#allocation7 + $0x8] sm:$0xf]
    %v251 = vld [vmem:[#allocation7 + $0xc] sm:$0xf]
    %v252 = vld [vmem:[#allocation7 + $0x10] sm:$0xf]
    %v253 = vld [vmem:[#allocation7 + $0x14] sm:$0xf]
    %v254 = vld [vmem:[#allocation7 + $0x18] sm:$0xf]
    %v255 = vld [vmem:[#allocation7 + $0x1c] sm:$0xf]
    %v256 = vld [vmem:[#allocation7 + $0x20] sm:$0xf]
    %v257 = vld [vmem:[#allocation7 + $0x24] sm:$0xf]
    %v258 = vld [vmem:[#allocation7 + $0x28] sm:$0xf]
    %v259 = vld [vmem:[#allocation7 + $0x2c] sm:$0xf]
    %v260 = vld [vmem:[#allocation7 + $0x30] sm:$0xf]
    %v261 = vld [vmem:[#allocation7 + $0x34] sm:$0xf]
    %v262 = vld [vmem:[#allocation7 + $0x38] sm:$0xf]
    %v263 = vld [vmem:[#allocation7 + $0x3c] sm:$0xf]
    %v264 = vld [vmem:[#allocation7 + $0x40] sm:$0xf]
    %v265 = vld [vmem:[#allocation7 + $0x44] sm:$0xf]
    %v266 = vld [vmem:[#allocation7 + $0x48] sm:$0xf]
    %v267 = vld [vmem:[#allocation7 + $0x4c] sm:$0xf]
    %v268 = vld [vmem:[#allocation7 + $0x50] sm:$0xf]
    %v269 = vld [vmem:[#allocation7 + $0x54] sm:$0xf]
    %v270 = vld [vmem:[#allocation7 + $0x58] sm:$0xf]
    %v271 = vld [vmem:[#allocation7 + $0x5c] sm:$0xf]
    %v272 = vld [vmem:[#allocation7 + $0x60] sm:$0xf]
    %v273 = vld [vmem:[#allocation7 + $0x64] sm:$0xf]
    %v274 = vld [vmem:[#allocation7 + $0x68] sm:$0xf]
    %v275 = vld [vmem:[#allocation7 + $0x6c] sm:$0xf]
    %v276 = vld [vmem:[#allocation7 + $0x70] sm:$0xf]
    %v277 = vld [vmem:[#allocation7 + $0x74] sm:$0xf]
    %v278 = vld [vmem:[#allocation7 + $0x78] sm:$0xf]
    %v279 = vld [vmem:[#allocation7 + $0x7c] sm:$0xf]
    %v312 = vunpack.c.l.b16 %v248
    %v313 = vunpack.c.l.b16 %v249
    %v314 = vunpack.c.l.b16 %v250
    %v315 = vunpack.c.l.b16 %v251
    %v316 = vunpack.c.l.b16 %v252
    %v317 = vunpack.c.l.b16 %v253
    %v318 = vunpack.c.l.b16 %v254
    %v319 = vunpack.c.l.b16 %v255
    %v320 = vunpack.c.l.b16 %v256
    %v321 = vunpack.c.l.b16 %v257
    %v322 = vunpack.c.l.b16 %v258
    %v323 = vunpack.c.l.b16 %v259
    %v324 = vunpack.c.l.b16 %v260
    %v325 = vunpack.c.l.b16 %v261
    %v326 = vunpack.c.l.b16 %v262
    %v327 = vunpack.c.l.b16 %v263
    %v328 = vunpack.c.l.b16 %v264
    %v329 = vunpack.c.l.b16 %v265
    %v330 = vunpack.c.l.b16 %v266
    %v331 = vunpack.c.l.b16 %v267
    %v332 = vunpack.c.l.b16 %v268
    %v333 = vunpack.c.l.b16 %v269
    %v334 = vunpack.c.l.b16 %v270
    %v335 = vunpack.c.l.b16 %v271
    %v336 = vunpack.c.l.b16 %v272
    %v337 = vunpack.c.l.b16 %v273
    %v338 = vunpack.c.l.b16 %v274
    %v339 = vunpack.c.l.b16 %v275
    %v340 = vunpack.c.l.b16 %v276
    %v341 = vunpack.c.l.b16 %v277
    %v342 = vunpack.c.l.b16 %v278
    %v343 = vunpack.c.l.b16 %v279
    %v344 = vpack.c.b16 %v313, %v312
    %v345 = vpack.c.b16 %v315, %v314
    %v346 = vpack.c.b16 %v317, %v316
    %v347 = vpack.c.b16 %v319, %v318
    %v348 = vpack.c.b16 %v321, %v320
    %v349 = vpack.c.b16 %v323, %v322
    %v350 = vpack.c.b16 %v325, %v324
    %v351 = vpack.c.b16 %v327, %v326
    %v352 = vpack.c.b16 %v329, %v328
    %v353 = vpack.c.b16 %v331, %v330
    %v354 = vpack.c.b16 %v333, %v332
    %v355 = vpack.c.b16 %v335, %v334
    %v356 = vpack.c.b16 %v337, %v336
    %v357 = vpack.c.b16 %v339, %v338
    %v358 = vpack.c.b16 %v341, %v340
    %v359 = vpack.c.b16 %v343, %v342
    %376 = vmatpush.bf16.msra.mxu0 %v351
    %377 = vmatpush.bf16.msra.mxu0 %v350
    %378 = vmatpush.bf16.msra.mxu0 %v349
    %379 = vmatpush.bf16.msra.mxu0 %v348
    %380 = vmatpush.bf16.msra.mxu0 %v347
    %381 = vmatpush.bf16.msra.mxu0 %v346
    %382 = vmatpush.bf16.msra.mxu0 %v345
    %383 = vmatpush.bf16.msra.mxu0 %v344
    %384 = vmatmul.bf16.gmra.mxu0 %v246
    %v385 = vpop.f32.mrf.mxu0
    %v386 = vadd.f32 0.0, %v385
    %v387 = vpop.f32.mrf.mxu0
    %388 = vdwg.mxu0
    %389 = vmatpush.bf16.msra.mxu0 %v359
    %390 = vmatpush.bf16.msra.mxu0 %v358
    %391 = vmatpush.bf16.msra.mxu0 %v357
    %392 = vmatpush.bf16.msra.mxu0 %v356
    %393 = vmatpush.bf16.msra.mxu0 %v355
    %394 = vmatpush.bf16.msra.mxu0 %v354
    %395 = vmatpush.bf16.msra.mxu0 %v353
    %396 = vmatpush.bf16.msra.mxu0 %v352
    %397 = vmatmul.bf16.gmra.mxu0 %v247
    %v398 = vpop.f32.mrf.mxu0
    %v399 = vadd.f32 %v386, %v398
    %v400 = vpop.f32.mrf.mxu0
    %401 = vdwg.mxu0
    %v402 = vld [vmem:[%s6] sm:$0x1]
    %v404 = vperm.slane %v402, 0
    %v406 = vadd.f32 %v399, %v404
    %vm407 = vcmask 23552
    %408 = vst.msk [vmem:[%s7] sm:$0xff] %vm407, %v406
    // Predicated region
    $region46: #{tpu_custom_call.1} parent=1 // pred_check
      _
    $region47: #{tpu_custom_call.1} parent=1 // pred_check_branch
      %410 = sbr.rel (0) target = $region49
    $region48: #{tpu_custom_call.1} parent=1 // pred_region
      _
    $region49: #{tpu_custom_call.1} parent=1 // pred_fallthru
      _
    // Predicated region
    $region50: #{tpu_custom_call.1} parent=1 // pred_check
      _
    $region51: #{tpu_custom_call.1} parent=1 // pred_check_branch
      %412 = sbr.rel (0) target = $region53
    $region52: #{tpu_custom_call.1} parent=1 // pred_region
      _
    $region53: #{tpu_custom_call.1} parent=1 // pred_fallthru
      _
    %413 = vsyncpa [#allocation3], 1
    %414 = vsyncpa [#allocation5], 1
    %415 = vsyncpa [#allocation8], 1

</llo_original>
